<compile_context>
chip_gen: v6e
topology: v6e:2x2x1
jax: 0.10.0
libtpu: 0.0.40
codegen_flags: <defaults>
</compile_context>

<pallas_src>
import jax
import jax.numpy as jnp
from jax.experimental import pallas as pl
from jax.experimental.pallas import tpu as pltpu


def lstm_sa_kernel(xu_ref, wu_ref, xh_ref, wxh_ref, wg_ref, b_ref, cx_ref,
                   out_ref):
    # user_gate = tanh([user1|user2] @ [Wu1;Wu2])   -- one dot instead of two
    user_pre = jnp.dot(xu_ref[...], wu_ref[...],
                       preferred_element_type=jnp.float32)
    user_gate = jnp.tanh(user_pre)

    # gates = [word|hx] @ [Wx;Wh] + user_gate @ Wu2h + (bx+bu+bh)   -> (B, 4H)
    gates = (
        jnp.dot(xh_ref[...], wxh_ref[...], preferred_element_type=jnp.float32)
        + jnp.dot(user_gate.astype(wg_ref.dtype), wg_ref[...],
                  preferred_element_type=jnp.float32)
        + b_ref[...]
    )

    H = cx_ref.shape[-1]
    # Full-vreg transcendentals once, then select the needed lane segments.
    sig = jax.nn.sigmoid(gates)
    tnh = jnp.tanh(gates)
    ingate     = sig[:, 0 * H:1 * H]
    forgetgate = sig[:, 1 * H:2 * H]
    cellgate   = tnh[:, 2 * H:3 * H]
    outgate    = sig[:, 3 * H:4 * H]

    cy = cx_ref[...] * forgetgate + ingate * cellgate
    hy = outgate * jnp.tanh(cy)

    # Single lane-denser output slab: [hy | cy]  -> (B, 2H)
    out_ref[...] = jnp.concatenate([hy, cy], axis=-1).astype(out_ref.dtype)


def lstm_sa_cell(word, user1, user2, hx, cx,
                 w_u12u, w_u22u, w_x2h, b_x2h, w_u2h, b_u2h, w_h2h, b_h2h):
    B, H = hx.shape

    mm_dtype = jnp.bfloat16  # MXU-native on v5e/v6e/v7x; f32 accumulation kept.

    # Static fusions (in a real model these weight concats / bias sum would be
    # done once, outside the step loop).
    xu   = jnp.concatenate([user1, user2], axis=-1).astype(mm_dtype)   # (B, 2*IN)
    wu   = jnp.concatenate([w_u12u, w_u22u], axis=0).astype(mm_dtype)  # (2*IN, IN)
    xh   = jnp.concatenate([word, hx], axis=-1).astype(mm_dtype)       # (B, IN+H)
    wxh  = jnp.concatenate([w_x2h, w_h2h], axis=0).astype(mm_dtype)    # (IN+H, 4H)
    wg   = w_u2h.astype(mm_dtype)                                      # (IN, 4H)
    bias = (b_x2h + b_u2h + b_h2h).astype(jnp.float32)                 # (1, 4H)

    vmem = pl.BlockSpec(memory_space=pltpu.MemorySpace.VMEM)
    hc = pl.pallas_call(
        lstm_sa_kernel,
        out_shape=jax.ShapeDtypeStruct((B, 2 * H), jnp.float32),
        in_specs=[vmem] * 7,
        out_specs=vmem,
    )(xu, wu, xh, wxh, wg, bias, cx.astype(jnp.float32))

    return hc[:, :H], hc[:, H:]


def reference(word, user1, user2, hx, cx,
              w_u12u, w_u22u, w_x2h, b_x2h, w_u2h, b_u2h, w_h2h, b_h2h):
    user_gate = jnp.tanh(user1 @ w_u12u + user2 @ w_u22u)
    gates = (word @ w_x2h + b_x2h) + (hx @ w_h2h + b_h2h) + (user_gate @ w_u2h + b_u2h)
    H = hx.shape[-1]
    i = jax.nn.sigmoid(gates[:, 0 * H:1 * H])
    f = jax.nn.sigmoid(gates[:, 1 * H:2 * H])
    g = jnp.tanh(gates[:, 2 * H:3 * H])
    o = jax.nn.sigmoid(gates[:, 3 * H:4 * H])
    cy = cx * f + i * g
    hy = o * jnp.tanh(cy)
    return hy, cy


if __name__ == "__main__":
    B = 8            # batch
    IN = 32          # input_size
    H = 32           # hidden_size

    key = jax.random.PRNGKey(0)
    ks = jax.random.split(key, 13)

    word  = jax.random.normal(ks[0], (B, IN), jnp.float32)
    user1 = jax.random.normal(ks[1], (B, IN), jnp.float32)
    user2 = jax.random.normal(ks[2], (B, IN), jnp.float32)
    hx    = jax.random.normal(ks[3], (B, H), jnp.float32)
    cx    = jax.random.normal(ks[4], (B, H), jnp.float32)

    scale = 0.1
    # weights stored as (in_features, out_features)
    w_u12u = scale * jax.random.normal(ks[5],  (IN, IN),    jnp.float32)
    w_u22u = scale * jax.random.normal(ks[6],  (IN, IN),    jnp.float32)
    w_x2h  = scale * jax.random.normal(ks[7],  (IN, 4 * H), jnp.float32)
    b_x2h  = scale * jax.random.normal(ks[8],  (1, 4 * H),  jnp.float32)
    w_u2h  = scale * jax.random.normal(ks[9],  (IN, 4 * H), jnp.float32)
    b_u2h  = scale * jax.random.normal(ks[10], (1, 4 * H),  jnp.float32)
    w_h2h  = scale * jax.random.normal(ks[11], (H, 4 * H),  jnp.float32)
    b_h2h  = scale * jax.random.normal(ks[12], (1, 4 * H),  jnp.float32)

    hy, cy = lstm_sa_cell(word, user1, user2, hx, cx,
                          w_u12u, w_u22u, w_x2h, b_x2h, w_u2h, b_u2h, w_h2h, b_h2h)
    jax.block_until_ready((hy, cy))

    hy_ref, cy_ref = reference(word, user1, user2, hx, cx,
                               w_u12u, w_u22u, w_x2h, b_x2h, w_u2h, b_u2h, w_h2h, b_h2h)

    # bf16 matmul operands (f32 accumulate) -> relaxed tolerance vs f32 reference.
    assert jnp.allclose(hy, hy_ref, atol=2e-2, rtol=2e-2), \
        float(jnp.max(jnp.abs(hy - hy_ref)))
    assert jnp.allclose(cy, cy_ref, atol=2e-2, rtol=2e-2), \
        float(jnp.max(jnp.abs(cy - cy_ref)))

    print("KERNEL_OK")
</pallas_src>

<mosaic_0001>
module attributes {stable_mosaic.version = 11 : i64} {
  func.func @lstm_sa_kernel(%arg0: memref<8x64xbf16, #tpu.memory_space<vmem>>, %arg1: memref<64x32xbf16, #tpu.memory_space<vmem>>, %arg2: memref<8x64xbf16, #tpu.memory_space<vmem>>, %arg3: memref<64x128xbf16, #tpu.memory_space<vmem>>, %arg4: memref<32x128xbf16, #tpu.memory_space<vmem>>, %arg5: memref<1x128xf32, #tpu.memory_space<vmem>>, %arg6: memref<8x32xf32, #tpu.memory_space<vmem>>, %arg7: memref<8x64xf32, #tpu.memory_space<vmem>>) attributes {dimension_semantics = [], scalar_prefetch = 0 : i64, scratch_operands = 0 : i64, tpu.core_type = #tpu.core_type<tc>} {
    %c0 = arith.constant 0 : index
    %c0_0 = arith.constant 0 : index
    %0 = vector.load %arg0[%c0, %c0_0] : memref<8x64xbf16, #tpu.memory_space<vmem>>, vector<8x64xbf16>
    %c0_1 = arith.constant 0 : index
    %c0_2 = arith.constant 0 : index
    %1 = vector.load %arg1[%c0_1, %c0_2] : memref<64x32xbf16, #tpu.memory_space<vmem>>, vector<64x32xbf16>
    %cst = arith.constant dense<0.000000e+00> : vector<8x32xf32>
    %2 = tpu.matmul %0, %1, %cst {dimension_numbers = #tpu.dot_dimension_numbers<[1], [0], [0], [1], [0, 0, 1, 1], [], []>} : vector<8x64xbf16>, vector<64x32xbf16>, vector<8x32xf32> -> vector<8x32xf32>
    %3 = math.tanh %2 : vector<8x32xf32>
    %c0_3 = arith.constant 0 : index
    %c0_4 = arith.constant 0 : index
    %4 = vector.load %arg2[%c0_3, %c0_4] : memref<8x64xbf16, #tpu.memory_space<vmem>>, vector<8x64xbf16>
    %c0_5 = arith.constant 0 : index
    %c0_6 = arith.constant 0 : index
    %5 = vector.load %arg3[%c0_5, %c0_6] : memref<64x128xbf16, #tpu.memory_space<vmem>>, vector<64x128xbf16>
    %cst_7 = arith.constant dense<0.000000e+00> : vector<8x128xf32>
    %6 = tpu.matmul %4, %5, %cst_7 {dimension_numbers = #tpu.dot_dimension_numbers<[1], [0], [0], [1], [0, 0, 1, 1], [], []>} : vector<8x64xbf16>, vector<64x128xbf16>, vector<8x128xf32> -> vector<8x128xf32>
    %7 = arith.truncf %3 : vector<8x32xf32> to vector<8x32xbf16>
    %c0_8 = arith.constant 0 : index
    %c0_9 = arith.constant 0 : index
    %8 = vector.load %arg4[%c0_8, %c0_9] : memref<32x128xbf16, #tpu.memory_space<vmem>>, vector<32x128xbf16>
    %cst_10 = arith.constant dense<0.000000e+00> : vector<8x128xf32>
    %9 = tpu.matmul %7, %8, %cst_10 {dimension_numbers = #tpu.dot_dimension_numbers<[1], [0], [0], [1], [0, 0, 1, 1], [], []>} : vector<8x32xbf16>, vector<32x128xbf16>, vector<8x128xf32> -> vector<8x128xf32>
    %10 = arith.addf %6, %9 : vector<8x128xf32>
    %c0_11 = arith.constant 0 : index
    %c0_12 = arith.constant 0 : index
    %11 = vector.load %arg5[%c0_11, %c0_12] : memref<1x128xf32, #tpu.memory_space<vmem>>, vector<1x128xf32>
    %12 = vector.broadcast %11 : vector<1x128xf32> to vector<8x128xf32>
    %13 = arith.addf %10, %12 : vector<8x128xf32>
    %14 = arith.negf %13 : vector<8x128xf32>
    %15 = math.exp %14 : vector<8x128xf32>
    %cst_13 = arith.constant 1.000000e+00 : f32
    %16 = vector.broadcast %cst_13 : f32 to vector<8x128xf32>
    %17 = arith.addf %16, %15 : vector<8x128xf32>
    %18 = arith.divf %16, %17 : vector<8x128xf32>
    %19 = math.tanh %13 : vector<8x128xf32>
    %20 = vector.extract_strided_slice %18 {offsets = [0, 0], sizes = [8, 32], strides = [1, 1]} : vector<8x128xf32> to vector<8x32xf32>
    %21 = vector.extract_strided_slice %18 {offsets = [0, 32], sizes = [8, 32], strides = [1, 1]} : vector<8x128xf32> to vector<8x32xf32>
    %22 = vector.extract_strided_slice %19 {offsets = [0, 64], sizes = [8, 32], strides = [1, 1]} : vector<8x128xf32> to vector<8x32xf32>
    %23 = vector.extract_strided_slice %18 {offsets = [0, 96], sizes = [8, 32], strides = [1, 1]} : vector<8x128xf32> to vector<8x32xf32>
    %c0_14 = arith.constant 0 : index
    %c0_15 = arith.constant 0 : index
    %24 = vector.load %arg6[%c0_14, %c0_15] : memref<8x32xf32, #tpu.memory_space<vmem>>, vector<8x32xf32>
    %25 = arith.mulf %24, %21 : vector<8x32xf32>
    %26 = arith.mulf %20, %22 : vector<8x32xf32>
    %27 = arith.addf %25, %26 : vector<8x32xf32>
    %28 = math.tanh %27 : vector<8x32xf32>
    %29 = arith.mulf %23, %28 : vector<8x32xf32>
    %30 = tpu.concatenate %29, %27 in 1 : vector<8x32xf32>, vector<8x32xf32> -> vector<8x64xf32>
    %c0_16 = arith.constant 0 : index
    %c0_17 = arith.constant 0 : index
    %31 = vector.load %arg7[%c0_16, %c0_17] : memref<8x64xf32, #tpu.memory_space<vmem>>, vector<8x64xf32>
    tpu.vector_store %arg7[%c0_16, %c0_17], %30 {strides = array<i32>} : memref<8x64xf32, #tpu.memory_space<vmem>>, vector<8x64xf32>,
    return
  }
}

</mosaic_0001>

<llo_original>
// kernel: tpu_custom_call.1
$region0: #{tpu_custom_call.1}
  #allocation0 [shape = 'u32[]', space=smem, size = 0x4, offset = 0x4, fixed_abs, tag = 'smem constant byte address 0x4 - core index']
  #allocation1 [shape = 'u32[144,128]{1,0:T(1,128)}', space=vmem, size = 0x12000, scoped, tag = 'internal scratch']
  %s0 = inlined_call_operand.hbm [shape: bf16[8,64], index: 0, kind: input, shape index: {}]
  %s1 = inlined_call_operand.vmem [shape: bf16[64,32], index: 1, kind: input, shape index: {}]
  %s2 = inlined_call_operand.hbm [shape: bf16[8,64], index: 2, kind: input, shape index: {}]
  %s3 = inlined_call_operand.vmem [shape: bf16[64,128], index: 3, kind: input, shape index: {}]
  %s4 = inlined_call_operand.vmem [shape: bf16[32,128], index: 4, kind: input, shape index: {}]
  %s5 = inlined_call_operand.vmem [shape: f32[1,128], index: 5, kind: input, shape index: {}]
  %s6 = inlined_call_operand.vmem [shape: f32[8,32], index: 6, kind: input, shape index: {}]
  %s7 = inlined_call_operand.hbm [shape: f32[8,64], index: 7, kind: output, shape index: {}]
  %s8 = sld [smem:[#allocation0]]
  $region46: #{tpu_custom_call.1} parent=0
    _
  %s10 = ssub.s32 1, %s8
  %s11 = scalar_select 0, %s10, %s8
  $region1: #{tpu_custom_call.1} parent=0
    #allocation2 [shape = 'u8[2048]{0}', space=vmem, size = 0x800, scoped, tag = 'input window, operand 0, single buffered']
    #allocation3 [shape = 's32[1]{0}', space=sflag, size = 0x4, scoped, tag = 'scoped memory for tpu_custom_call.1']
    #allocation4 [shape = 's32[1]{0}', space=sflag, size = 0x4, scoped, tag = 'scoped memory for tpu_custom_call.1']
    #allocation5 [shape = 'u8[2048]{0}', space=vmem, size = 0x800, scoped, tag = 'input window, operand 2, single buffered']
    #allocation6 [shape = 's32[1]{0}', space=sflag, size = 0x4, scoped, tag = 'scoped memory for tpu_custom_call.1']
    #allocation7 [shape = 'u8[4096]{0}', space=vmem, size = 0x1000, scoped, tag = 'output window, operand 0, single buffered']
    %12 = vsyncpa [#allocation3], 0
    %13 = vsyncpa [#allocation6], 0
    %14 = vsyncpa [#allocation4], 0
    // Predicated region
    $region2: #{tpu_custom_call.1} parent=1 // pred_check
      _
    $region3: #{tpu_custom_call.1} parent=1 // pred_check_branch
      %16 = sbr.rel (0) target = $region5
    $region4: #{tpu_custom_call.1} parent=1 // pred_region
      %s18 = ssub.s32 64, 64
      %19 = vsyncadd [#allocation3], %s18
      %s21 = sshll.u32 [#allocation2], 4
      %s22 = int_to_ptr.vmem [resolvable:$true] %s21
      %24 = dma.hbm_to_vmem [thread:$0]  %s0, 64, %s22, [#allocation3]
    $region5: #{tpu_custom_call.1} parent=1 // pred_fallthru
      _
    // Predicated region
    $region6: #{tpu_custom_call.1} parent=1 // pred_check
      _
    $region7: #{tpu_custom_call.1} parent=1 // pred_check_branch
      %26 = sbr.rel (0) target = $region9
    $region8: #{tpu_custom_call.1} parent=1 // pred_region
      _
    $region9: #{tpu_custom_call.1} parent=1 // pred_fallthru
      _
    // Predicated region
    $region10: #{tpu_custom_call.1} parent=1 // pred_check
      _
    $region11: #{tpu_custom_call.1} parent=1 // pred_check_branch
      %28 = sbr.rel (0) target = $region13
    $region12: #{tpu_custom_call.1} parent=1 // pred_region
      %s30 = ssub.s32 64, 64
      %31 = vsyncadd [#allocation6], %s30
      %s33 = sshll.u32 [#allocation5], 4
      %s34 = int_to_ptr.vmem [resolvable:$true] %s33
      %36 = dma.hbm_to_vmem [thread:$0]  %s2, 64, %s34, [#allocation6]
    $region13: #{tpu_custom_call.1} parent=1 // pred_fallthru
      _
    // Predicated region
    $region14: #{tpu_custom_call.1} parent=1 // pred_check
      _
    $region15: #{tpu_custom_call.1} parent=1 // pred_check_branch
      %38 = sbr.rel (0) target = $region17
    $region16: #{tpu_custom_call.1} parent=1 // pred_region
      _
    $region17: #{tpu_custom_call.1} parent=1 // pred_fallthru
      _
    // Predicated region
    $region18: #{tpu_custom_call.1} parent=1 // pred_check
      _
    $region19: #{tpu_custom_call.1} parent=1 // pred_check_branch
      %40 = sbr.rel (0) target = $region21
    $region20: #{tpu_custom_call.1} parent=1 // pred_region
      _
    $region21: #{tpu_custom_call.1} parent=1 // pred_fallthru
      _
    // Predicated region
    $region22: #{tpu_custom_call.1} parent=1 // pred_check
      _
    $region23: #{tpu_custom_call.1} parent=1 // pred_check_branch
      %42 = sbr.rel (0) target = $region25
    $region24: #{tpu_custom_call.1} parent=1 // pred_region
      _
    $region25: #{tpu_custom_call.1} parent=1 // pred_fallthru
      _
    // Predicated region
    $region26: #{tpu_custom_call.1} parent=1 // pred_check
      _
    $region27: #{tpu_custom_call.1} parent=1 // pred_check_branch
      %44 = sbr.rel (0) target = $region29
    $region28: #{tpu_custom_call.1} parent=1 // pred_region
      _
    $region29: #{tpu_custom_call.1} parent=1 // pred_fallthru
      _
    // Predicated region
    $region30: #{tpu_custom_call.1} parent=1 // pred_check
      _
    $region31: #{tpu_custom_call.1} parent=1 // pred_check_branch
      %46 = sbr.rel (0) target = $region33
    $region32: #{tpu_custom_call.1} parent=1 // pred_region
      %47 = dma.done [#allocation3], 64
    $region33: #{tpu_custom_call.1} parent=1 // pred_fallthru
      _
    // Predicated region
    $region34: #{tpu_custom_call.1} parent=1 // pred_check
      _
    $region35: #{tpu_custom_call.1} parent=1 // pred_check_branch
      %49 = sbr.rel (0) target = $region37
    $region36: #{tpu_custom_call.1} parent=1 // pred_region
      %50 = dma.done [#allocation6], 64
    $region37: #{tpu_custom_call.1} parent=1 // pred_fallthru
      _
    %v52 = vld [vmem:[#allocation2] sm:$0xf]
    %v53 = vld [vmem:[%s1] sm:$0xf]
    %v54 = vld [vmem:[%s1 + $0x4] sm:$0xf]
    %v55 = vld [vmem:[%s1 + $0x8] sm:$0xf]
    %v56 = vld [vmem:[%s1 + $0xc] sm:$0xf]
    %v57 = vld [vmem:[%s1 + $0x10] sm:$0xf]
    %v58 = vld [vmem:[%s1 + $0x14] sm:$0xf]
    %v59 = vld [vmem:[%s1 + $0x18] sm:$0xf]
    %v60 = vld [vmem:[%s1 + $0x1c] sm:$0xf]
    %v69 = vunpack.c.l.b16 %v53
    %v70 = vunpack.c.l.b16 %v54
    %v71 = vunpack.c.l.b16 %v55
    %v72 = vunpack.c.l.b16 %v56
    %v73 = vunpack.c.l.b16 %v57
    %v74 = vunpack.c.l.b16 %v58
    %v75 = vunpack.c.l.b16 %v59
    %v76 = vunpack.c.l.b16 %v60
    %v77 = vpack.c.b16 %v70, %v69
    %v78 = vpack.c.b16 %v72, %v71
    %v79 = vpack.c.b16 %v74, %v73
    %v80 = vpack.c.b16 %v76, %v75
    %vm85 = vcmask 523264
    %v87 = vsel %vm85, %v52, 0
    %89 = vmatprep.subr.bf16.mxu0 0
    %90 = vmatpush1.bf16.msra.mxu0 0
    %91 = vmatprep.subr.bf16.mxu0 0
    %92 = vmatpush1.bf16.msra.mxu0 0
    %93 = vmatprep.subr.bf16.mxu0 0
    %94 = vmatpush1.bf16.msra.mxu0 0
    %95 = vmatprep.subr.bf16.mxu0 0
    %96 = vmatpush1.bf16.msra.mxu0 0
    %97 = vmatprep.subr.bf16.mxu0 0
    %98 = vmatpush1.bf16.msra.mxu0 %v80
    %99 = vmatprep.subr.bf16.mxu0 0
    %100 = vmatpush1.bf16.msra.mxu0 %v79
    %101 = vmatprep.subr.bf16.mxu0 0
    %102 = vmatpush1.bf16.msra.mxu0 %v78
    %103 = vmatprep.subr.bf16.mxu0 0
    %104 = vmatpush1.bf16.msra.mxu0 %v77
    %105 = vmatprep.subr.bf16.mxu0 0
    %106 = vmatpush2.bf16.msra.mxu0 0
    %107 = vmatprep.subr.bf16.mxu0 0
    %108 = vmatpush2.bf16.msra.mxu0 0
    %109 = vmatprep.subr.bf16.mxu0 0
    %110 = vmatpush2.bf16.msra.mxu0 0
    %111 = vmatprep.subr.bf16.mxu0 0
    %112 = vmatpush2.bf16.msra.mxu0 0
    %113 = vmatprep.subr.bf16.mxu0 0
    %114 = vmatpush2.bf16.msra.mxu0 0
    %115 = vmatprep.subr.bf16.mxu0 0
    %116 = vmatpush2.bf16.msra.mxu0 0
    %117 = vmatprep.subr.bf16.mxu0 0
    %118 = vmatpush2.bf16.msra.mxu0 0
    %119 = vmatprep.subr.bf16.mxu0 0
    %120 = vmatpush2.bf16.msra.mxu0 0
    %121 = vmatprep.mubr.bf16.mxu0 0
    %122 = vmatmul.mubr.bf16.gmra.mxu0 %v87
    %v123 = vpop.f32.mrf.mxu0
    %v124 = vadd.f32 0.0, %v123
    %v125 = vpop.f32.mrf.mxu0
    %v126 = vpop.f32.mrf.mxu0
    %v127 = vpop.f32.mrf.mxu0
    %128 = vdwg.mxu0
    %v129 = vtanh.pop %v124
    %v130 = vld [vmem:[#allocation5] sm:$0xf]
    %v131 = vld [vmem:[%s3] sm:$0xf]
    %v132 = vld [vmem:[%s3 + $0x4] sm:$0xf]
    %v133 = vld [vmem:[%s3 + $0x8] sm:$0xf]
    %v134 = vld [vmem:[%s3 + $0xc] sm:$0xf]
    %v135 = vld [vmem:[%s3 + $0x10] sm:$0xf]
    %v136 = vld [vmem:[%s3 + $0x14] sm:$0xf]
    %v137 = vld [vmem:[%s3 + $0x18] sm:$0xf]
    %v138 = vld [vmem:[%s3 + $0x1c] sm:$0xf]
    %v139 = vpack.c.bf16 %v129, %v129
    %v140 = vld [vmem:[%s4] sm:$0xf]
    %v141 = vld [vmem:[%s4 + $0x4] sm:$0xf]
    %v142 = vld [vmem:[%s4 + $0x8] sm:$0xf]
    %v143 = vld [vmem:[%s4 + $0xc] sm:$0xf]
    %v148 = vunpack.c.l.b16 %v140
    %v149 = vunpack.c.l.b16 %v141
    %v150 = vunpack.c.l.b16 %v142
    %v151 = vunpack.c.l.b16 %v143
    %v152 = vpack.c.b16 %v149, %v148
    %v153 = vpack.c.b16 %v151, %v150
    %vm156 = vcmask 261120
    %v158 = vsel %vm156, %v139, 0
    %160 = vmatprep.subr.bf16.mxu0 0
    %161 = vmatpush1.bf16.msra.mxu0 0
    %162 = vmatprep.subr.bf16.mxu0 0
    %163 = vmatpush1.bf16.msra.mxu0 0
    %164 = vmatprep.subr.bf16.mxu0 0
    %165 = vmatpush1.bf16.msra.mxu0 0
    %166 = vmatprep.subr.bf16.mxu0 0
    %167 = vmatpush1.bf16.msra.mxu0 0
    %168 = vmatprep.subr.bf16.mxu0 0
    %169 = vmatpush1.bf16.msra.mxu0 0
    %170 = vmatprep.subr.bf16.mxu0 0
    %171 = vmatpush1.bf16.msra.mxu0 0
    %172 = vmatprep.subr.bf16.mxu0 0
    %173 = vmatpush1.bf16.msra.mxu0 %v153
    %174 = vmatprep.subr.bf16.mxu0 0
    %175 = vmatpush1.bf16.msra.mxu0 %v152
    %176 = vmatprep.subr.bf16.mxu0 0
    %177 = vmatpush2.bf16.msra.mxu0 0
    %178 = vmatprep.subr.bf16.mxu0 0
    %179 = vmatpush2.bf16.msra.mxu0 0
    %180 = vmatprep.subr.bf16.mxu0 0
    %181 = vmatpush2.bf16.msra.mxu0 0
    %182 = vmatprep.subr.bf16.mxu0 0
    %183 = vmatpush2.bf16.msra.mxu0 0
    %184 = vmatprep.subr.bf16.mxu0 0
    %185 = vmatpush2.bf16.msra.mxu0 0
    %186 = vmatprep.subr.bf16.mxu0 0
    %187 = vmatpush2.bf16.msra.mxu0 0
    %188 = vmatprep.subr.bf16.mxu0 0
    %189 = vmatpush2.bf16.msra.mxu0 0
    %190 = vmatprep.subr.bf16.mxu0 0
    %191 = vmatpush2.bf16.msra.mxu0 0
    %192 = vmatprep.mubr.bf16.mxu0 0
    %193 = vmatmul.mubr.bf16.gmra.mxu0 %v158
    %v194 = vpop.f32.mrf.mxu0
    %v195 = vadd.f32 0.0, %v194
    %v196 = vpop.f32.mrf.mxu0
    %v197 = vpop.f32.mrf.mxu0
    %v198 = vpop.f32.mrf.mxu0
    %199 = vdwg.mxu0
    %v208 = vunpack.c.l.b16 %v131
    %v209 = vunpack.c.l.b16 %v132
    %v210 = vunpack.c.l.b16 %v133
    %v211 = vunpack.c.l.b16 %v134
    %v212 = vunpack.c.l.b16 %v135
    %v213 = vunpack.c.l.b16 %v136
    %v214 = vunpack.c.l.b16 %v137
    %v215 = vunpack.c.l.b16 %v138
    %v216 = vpack.c.b16 %v209, %v208
    %v217 = vpack.c.b16 %v211, %v210
    %v218 = vpack.c.b16 %v213, %v212
    %v219 = vpack.c.b16 %v215, %v214
    %v225 = vsel %vm85, %v130, 0
    %227 = vmatprep.subr.bf16.mxu0 0
    %228 = vmatpush1.bf16.msra.mxu0 0
    %229 = vmatprep.subr.bf16.mxu0 0
    %230 = vmatpush1.bf16.msra.mxu0 0
    %231 = vmatprep.subr.bf16.mxu0 0
    %232 = vmatpush1.bf16.msra.mxu0 0
    %233 = vmatprep.subr.bf16.mxu0 0
    %234 = vmatpush1.bf16.msra.mxu0 0
    %235 = vmatprep.subr.bf16.mxu0 0
    %236 = vmatpush1.bf16.msra.mxu0 %v219
    %237 = vmatprep.subr.bf16.mxu0 0
    %238 = vmatpush1.bf16.msra.mxu0 %v218
    %239 = vmatprep.subr.bf16.mxu0 0
    %240 = vmatpush1.bf16.msra.mxu0 %v217
    %241 = vmatprep.subr.bf16.mxu0 0
    %242 = vmatpush1.bf16.msra.mxu0 %v216
    %243 = vmatprep.subr.bf16.mxu0 0
    %244 = vmatpush2.bf16.msra.mxu0 0
    %245 = vmatprep.subr.bf16.mxu0 0
    %246 = vmatpush2.bf16.msra.mxu0 0
    %247 = vmatprep.subr.bf16.mxu0 0
    %248 = vmatpush2.bf16.msra.mxu0 0
    %249 = vmatprep.subr.bf16.mxu0 0
    %250 = vmatpush2.bf16.msra.mxu0 0
    %251 = vmatprep.subr.bf16.mxu0 0
    %252 = vmatpush2.bf16.msra.mxu0 0
    %253 = vmatprep.subr.bf16.mxu0 0
    %254 = vmatpush2.bf16.msra.mxu0 0
    %255 = vmatprep.subr.bf16.mxu0 0
    %256 = vmatpush2.bf16.msra.mxu0 0
    %257 = vmatprep.subr.bf16.mxu0 0
    %258 = vmatpush2.bf16.msra.mxu0 0
    %259 = vmatprep.mubr.bf16.mxu0 0
    %260 = vmatmul.mubr.bf16.gmra.mxu0 %v225
    %v261 = vpop.f32.mrf.mxu0
    %v262 = vadd.f32 %v195, %v261
    %v263 = vpop.f32.mrf.mxu0
    %v264 = vpop.f32.mrf.mxu0
    %v265 = vpop.f32.mrf.mxu0
    %266 = vdwg.mxu0
    %v267 = vld [vmem:[%s5] sm:$0x1]
    %v269 = vlaneseq
    %v270 = vshrl.u32 %v269, 7
    %v271 = vsub.s32 0, %v270
    %v272 = vrot.slane %v267, %v271
    %v274 = vadd.f32 %v262, %v272
    %v275 = vxor.u32 %v274, 2147483648
    %v276 = vmul.f32 %v275, 1.442695
    %v277 = vpow.pop %v276
    %v278 = vadd.f32 %v277, 1.0
    %v279 = vrcp.pop %v278
    %v280 = vmul.f32 1.0, %v279
    %v281 = vtanh.pop %v274
    %v282 = vld [vmem:[%s6] sm:$0xff]
    %284 = vrot.lane.b32.xlu0 %v280, 96
    %v285 = vpop.permute.xlu0 %284
    %v287 = vmul.f32 %v282, %v285
    %289 = vrot.lane.b32.xlu0 %v281, 64
    %v290 = vpop.permute.xlu0 %289
    %v292 = vmul.f32 %v280, %v290
    %v293 = vadd.f32 %v287, %v292
    %v294 = vtanh.pop %v293
    %296 = vrot.lane.b32.xlu0 %v294, 96
    %v297 = vpop.permute.xlu0 %296
    %v299 = vmul.f32 %v280, %v297
    %301 = vrot.lane.b32.xlu0 %v299, 32
    %v302 = vpop.permute.xlu0 %301
    %305 = vrot.lane.b32.xlu0 %v293, 32
    %v306 = vpop.permute.xlu0 %305
    %v308 = vsel %vm156, %v302, %v306
    %309 = vst.msk [vmem:[#allocation7] sm:$0xff] %vm85, %v308
    // Predicated region
    $region38: #{tpu_custom_call.1} parent=1 // pred_check
      _
    $region39: #{tpu_custom_call.1} parent=1 // pred_check_branch
      %311 = sbr.rel (0) target = $region41
    $region40: #{tpu_custom_call.1} parent=1 // pred_region
      %s313 = ssub.s32 128, 128
      %314 = vsyncadd [#allocation4], %s313
      %s316 = sshll.u32 [#allocation7], 4
      %s317 = int_to_ptr.vmem [resolvable:$true] %s316
      %319 = dma.vmem_to_hbm [thread:$0]  %s317, 128, %s7, [#allocation4]
    $region41: #{tpu_custom_call.1} parent=1 // pred_fallthru
      _
    // Predicated region
    $region42: #{tpu_custom_call.1} parent=1 // pred_check
      _
    $region43: #{tpu_custom_call.1} parent=1 // pred_check_branch
      %321 = sbr.rel (0) target = $region45
    $region44: #{tpu_custom_call.1} parent=1 // pred_region
      %322 = dma.done [#allocation4], 128
    $region45: #{tpu_custom_call.1} parent=1 // pred_fallthru
      _
    %323 = vsyncpa [#allocation3], 1
    %324 = vsyncpa [#allocation6], 1
    %325 = vsyncpa [#allocation4], 1

</llo_original>
